<compile_context>
chip_gen: v7x
topology: tpu7x:2x2x1
jax: 0.10.0
libtpu: 0.0.40
codegen_flags: <defaults>
</compile_context>

<pallas_src>
import jax
import jax.numpy as jnp
from jax.experimental import pallas as pl
from jax.experimental.pallas import tpu as pltpu

EPS = 1e-5  # BatchNorm2d default eps


def _round_up(x, m):
    return (x + m - 1) // m * m


# ---------------------------------------------------------------------------
# Pass 1: conv (matmul) + per-tile partial BatchNorm statistics
# ---------------------------------------------------------------------------
def conv_stats_kernel(patches_ref, w_ref, conv_ref, stats_ref):
    # patches_ref: (1, CKKp, tile_m), w_ref: (Coutp, CKKp)
    acc = jnp.dot(w_ref[...], patches_ref[0],
                  preferred_element_type=jnp.float32)          # (Coutp, tile_m)
    conv_ref[0] = acc
    # Per-channel partial sum and sum-of-squares (lane reduction).
    both = jnp.concatenate([acc, acc * acc], axis=0)            # (2*Coutp, tile_m)
    stats_ref[0, 0] = jnp.sum(both, axis=1, keepdims=True)      # (2*Coutp, 1)


# ---------------------------------------------------------------------------
# Pass 2: folded BatchNorm affine + PReLU (in place on the conv buffer)
# ---------------------------------------------------------------------------
def bn_prelu_kernel(conv_ref, scale_ref, shift_ref, alpha_ref, o_ref):
    y = conv_ref[0] * scale_ref[...] + shift_ref[...]           # (Coutp, tile_m)
    a = alpha_ref[0]                                            # SMEM scalar
    o_ref[0] = jnp.where(y >= 0.0, y, a * y)


# ---------------------------------------------------------------------------
# Plain-JAX glue: im2col in channel-major, lane-dense form (N, Cin*K*K, HW)
# ---------------------------------------------------------------------------
def _im2col_cfirst(x, K, stride, padding):
    N, Cin, H, W = x.shape
    Hout = (H + 2 * padding - K) // stride + 1
    Wout = (W + 2 * padding - K) // stride + 1
    xp = jnp.pad(x, ((0, 0), (0, 0), (padding, padding), (padding, padding)))
    cols = []
    for i in range(K):
        for j in range(K):
            cols.append(xp[:, :,
                           i:i + Hout * stride:stride,
                           j:j + Wout * stride:stride])   # (N, Cin, Hout, Wout)
    # (N, Cin, K*K, Hout, Wout); row ordering ci*K*K + i*K + j matches
    # weight.reshape(Cout, Cin*K*K)
    p = jnp.stack(cols, axis=2)
    return p.reshape(N, Cin * K * K, Hout * Wout), Hout, Wout


def conv_block_forward(x, weight, bias, gamma, beta, alpha, stride, padding,
                       tile_m=512):
    # bias cancels exactly against the training-mode BN mean subtraction.
    del bias
    N, Cin, H, W = x.shape
    Cout, _, K, _ = weight.shape

    patches, Hout, Wout = _im2col_cfirst(x, K, stride, padding)
    HW = Hout * Wout
    CKK = Cin * K * K

    CKKp = _round_up(CKK, 8)
    Coutp = _round_up(Cout, 8)
    tile_m = min(_round_up(tile_m, 128), _round_up(HW, 128))
    HWp = _round_up(HW, tile_m)
    num_t = HWp // tile_m

    patches_p = jnp.pad(patches, ((0, 0), (0, CKKp - CKK), (0, HWp - HW)))
    w_mat = jnp.pad(weight.reshape(Cout, CKK).astype(jnp.float32),
                    ((0, Coutp - Cout), (0, CKKp - CKK)))       # (Coutp, CKKp)

    # Explicit scoped-VMEM budget: double-buffered tiles + weights + headroom.
    tile_bytes = 4 * (CKKp * tile_m + Coutp * tile_m + 2 * Coutp)
    vmem_bytes = int(min(64 * 1024 * 1024,
                         max(16 * 1024 * 1024,
                             6 * tile_bytes + 4 * Coutp * CKKp + (1 << 20))))
    cparams = pltpu.CompilerParams(
        dimension_semantics=("parallel", "parallel"),
        vmem_limit_bytes=vmem_bytes)

    grid = (N, num_t)

    # ---- pass 1: conv + partial stats ------------------------------------
    conv_flat, stats = pl.pallas_call(
        conv_stats_kernel,
        out_shape=(jax.ShapeDtypeStruct((N, Coutp, HWp), jnp.float32),
                   jax.ShapeDtypeStruct((N, num_t, 2 * Coutp, 1), jnp.float32)),
        grid=grid,
        in_specs=[
            pl.BlockSpec((1, CKKp, tile_m), lambda n, t: (n, 0, t)),
            pl.BlockSpec((Coutp, CKKp), lambda n, t: (0, 0)),
        ],
        out_specs=(
            pl.BlockSpec((1, Coutp, tile_m), lambda n, t: (n, 0, t)),
            pl.BlockSpec((1, 1, 2 * Coutp, 1), lambda n, t: (n, t, 0, 0)),
        ),
        compiler_params=cparams,
    )(patches_p, w_mat)

    # ---- finalize batch stats, fold BN affine into scale/shift (tiny) -----
    m_total = jnp.float32(N * HW)
    sums = jnp.sum(stats[:, :, :Coutp, 0], axis=(0, 1))         # (Coutp,)
    sumsq = jnp.sum(stats[:, :, Coutp:, 0], axis=(0, 1))        # (Coutp,)
    mean = sums / m_total
    var = jnp.maximum(sumsq / m_total - mean * mean, 0.0)       # f32, biased
    gamma_p = jnp.pad(gamma.astype(jnp.float32), (0, Coutp - Cout))
    beta_p = jnp.pad(beta.astype(jnp.float32), (0, Coutp - Cout))
    scale = gamma_p * jax.lax.rsqrt(var + EPS)
    shift = beta_p - mean * scale

    # ---- pass 2: normalize + PReLU (in place over the conv buffer) --------
    out_full = pl.pallas_call(
        bn_prelu_kernel,
        out_shape=jax.ShapeDtypeStruct((N, Coutp, HWp), jnp.float32),
        grid=grid,
        in_specs=[
            pl.BlockSpec((1, Coutp, tile_m), lambda n, t: (n, 0, t)),
            pl.BlockSpec((Coutp, 1), lambda n, t: (0, 0)),
            pl.BlockSpec((Coutp, 1), lambda n, t: (0, 0)),
            pl.BlockSpec(memory_space=pltpu.MemorySpace.SMEM),
        ],
        out_specs=pl.BlockSpec((1, Coutp, tile_m), lambda n, t: (n, 0, t)),
        input_output_aliases={0: 0},
        compiler_params=cparams,
    )(conv_flat,
      scale.reshape(Coutp, 1),
      shift.reshape(Coutp, 1),
      jnp.reshape(alpha, (1,)).astype(jnp.float32))

    # Channel-major per image already: just slice padding and reshape (no
    # lane-level transpose).
    return out_full[:, :Cout, :HW].reshape(N, Cout, Hout, Wout)


def reference_forward(x, weight, bias, gamma, beta, alpha, stride, padding):
    # Pure-JAX reference (conv+bias -> train-mode BN -> PReLU).
    y = jax.lax.conv_general_dilated(
        x, weight, window_strides=(stride, stride),
        padding=[(padding, padding), (padding, padding)],
        dimension_numbers=("NCHW", "OIHW", "NCHW"))
    y = y + bias.reshape(1, -1, 1, 1)
    mean = jnp.mean(y, axis=(0, 2, 3), keepdims=True)
    var = jnp.mean((y - mean) ** 2, axis=(0, 2, 3), keepdims=True)
    yhat = (y - mean) / jnp.sqrt(var + EPS)
    y = yhat * gamma.reshape(1, -1, 1, 1) + beta.reshape(1, -1, 1, 1)
    return jnp.where(y >= 0, y, alpha * y)


if __name__ == "__main__":
    # ConvBlock(input_channels=4, output_channels=8, kernel_size=3,
    #           stride=1, padding=1, bias=True, norm=BatchNorm2d,
    #           activation='prelu')
    N, Cin, H, W = 2, 4, 16, 16
    Cout, K, stride, padding = 8, 3, 1, 1

    key = jax.random.PRNGKey(0)
    kx, kw, kb = jax.random.split(key, 3)

    x = jax.random.normal(kx, (N, Cin, H, W), dtype=jnp.float32)

    fan_in = Cin * K * K
    bound = 1.0 / (fan_in ** 0.5)
    weight = jax.random.uniform(kw, (Cout, Cin, K, K), jnp.float32,
                                minval=-bound, maxval=bound)
    bias = jax.random.uniform(kb, (Cout,), jnp.float32,
                              minval=-bound, maxval=bound)
    gamma = jnp.ones((Cout,), jnp.float32)    # BatchNorm2d weight init
    beta = jnp.zeros((Cout,), jnp.float32)    # BatchNorm2d bias init
    alpha = jnp.float32(0.25)                 # PReLU default init

    fwd = jax.jit(conv_block_forward,
                  static_argnames=("stride", "padding", "tile_m"))
    out = fwd(x, weight, bias, gamma, beta, alpha,
              stride=stride, padding=padding)
    out = jax.block_until_ready(out)

    ref = reference_forward(x, weight, bias, gamma, beta, alpha,
                            stride, padding)
    assert out.shape == (N, Cout, H, W)
    assert jnp.allclose(out, ref, atol=2e-4, rtol=2e-4), \
        f"max abs err {jnp.max(jnp.abs(out - ref))}"

    print("KERNEL_OK")
</pallas_src>

<mosaic_0001>
module attributes {stable_mosaic.version = 11 : i64} {
  func.func @conv_stats_kernel(%arg0: i32, %arg1: i32, %arg2: memref<1x40x256xf32, #tpu.memory_space<vmem>>, %arg3: memref<8x40xf32, #tpu.memory_space<vmem>>, %arg4: memref<1x8x256xf32, #tpu.memory_space<vmem>>, %arg5: memref<1x1x16x1xf32, #tpu.memory_space<vmem>>) attributes {dimension_semantics = [#tpu.dimension_semantics<parallel>, #tpu.dimension_semantics<parallel>], iteration_bounds = array<i64: 2, 1>, scalar_prefetch = 0 : i64, scratch_operands = 0 : i64, tpu.core_type = #tpu.core_type<tc>, window_params = [{transform_indices = @transform_0, window_bounds = array<i64: 1, 40, 256>}, {pipeline_mode = #tpu.pipeline_mode<synchronous>, transform_indices = @transform_1, window_bounds = array<i64: 8, 40>}, {transform_indices = @transform_2, window_bounds = array<i64: 1, 8, 256>}, {transform_indices = @transform_3, window_bounds = array<i64: 1, 1, 16, 1>}]} {
    %c0 = arith.constant 0 : index
    %c0_0 = arith.constant 0 : index
    %0 = vector.load %arg3[%c0, %c0_0] : memref<8x40xf32, #tpu.memory_space<vmem>>, vector<8x40xf32>
    %c0_1 = arith.constant 0 : index
    %c0_2 = arith.constant 0 : index
    %c0_3 = arith.constant 0 : index
    %1 = vector.load %arg2[%c0_1, %c0_2, %c0_3] : memref<1x40x256xf32, #tpu.memory_space<vmem>>, vector<1x40x256xf32>
    %2 = vector.shape_cast %1 : vector<1x40x256xf32> to vector<40x256xf32>
    %cst = arith.constant dense<0.000000e+00> : vector<8x256xf32>
    %3 = tpu.matmul %0, %2, %cst {dimension_numbers = #tpu.dot_dimension_numbers<[1], [0], [0], [1], [0, 0, 1, 1], [], []>} : vector<8x40xf32>, vector<40x256xf32>, vector<8x256xf32> -> vector<8x256xf32>
    %c0_4 = arith.constant 0 : index
    %c0_5 = arith.constant 0 : index
    %c0_6 = arith.constant 0 : index
    %4 = vector.load %arg4[%c0_4, %c0_5, %c0_6] : memref<1x8x256xf32, #tpu.memory_space<vmem>>, vector<1x8x256xf32>
    %5 = vector.shape_cast %4 : vector<1x8x256xf32> to vector<8x256xf32>
    %6 = vector.shape_cast %3 : vector<8x256xf32> to vector<1x8x256xf32>
    tpu.vector_store %arg4[%c0_4, %c0_5, %c0_6], %6 {strides = array<i32>} : memref<1x8x256xf32, #tpu.memory_space<vmem>>, vector<1x8x256xf32>,
    %7 = arith.mulf %3, %3 : vector<8x256xf32>
    %8 = tpu.concatenate %3, %7 in 0 : vector<8x256xf32>, vector<8x256xf32> -> vector<16x256xf32>
    %cst_7 = arith.constant dense<0.000000e+00> : vector<16xf32>
    %9 = vector.multi_reduction <add>, %8, %cst_7 [1] : vector<16x256xf32> to vector<16xf32>
    %10 = vector.shape_cast %9 : vector<16xf32> to vector<16x1xf32>
    %c0_8 = arith.constant 0 : index
    %c0_9 = arith.constant 0 : index
    %c0_10 = arith.constant 0 : index
    %c0_11 = arith.constant 0 : index
    %11 = vector.load %arg5[%c0_8, %c0_9, %c0_10, %c0_11] : memref<1x1x16x1xf32, #tpu.memory_space<vmem>>, vector<1x1x16x1xf32>
    %12 = vector.shape_cast %11 : vector<1x1x16x1xf32> to vector<16x1xf32>
    %13 = vector.shape_cast %10 : vector<16x1xf32> to vector<1x1x16x1xf32>
    tpu.vector_store %arg5[%c0_8, %c0_9, %c0_10, %c0_11], %13 {strides = array<i32>} : memref<1x1x16x1xf32, #tpu.memory_space<vmem>>, vector<1x1x16x1xf32>,
    return
  }
  func.func @transform_0(%arg0: i32, %arg1: i32) -> (i32, i32, i32) {
    %c0_i32 = arith.constant 0 : i32
    %c0_i32_0 = arith.constant 0 : i32
    return %arg0, %c0_i32, %arg1 : i32, i32, i32
  }
  func.func @transform_1(%arg0: i32, %arg1: i32) -> (i32, i32) {
    %c0_i32 = arith.constant 0 : i32
    %c0_i32_0 = arith.constant 0 : i32
    %c0_i32_1 = arith.constant 0 : i32
    return %c0_i32, %c0_i32_0 : i32, i32
  }
  func.func @transform_2(%arg0: i32, %arg1: i32) -> (i32, i32, i32) {
    %c0_i32 = arith.constant 0 : i32
    %c0_i32_0 = arith.constant 0 : i32
    return %arg0, %c0_i32, %arg1 : i32, i32, i32
  }
  func.func @transform_3(%arg0: i32, %arg1: i32) -> (i32, i32, i32, i32) {
    %c0_i32 = arith.constant 0 : i32
    %c0_i32_0 = arith.constant 0 : i32
    %c0_i32_1 = arith.constant 0 : i32
    return %arg0, %arg1, %c0_i32, %c0_i32_0 : i32, i32, i32, i32
  }
}

module attributes {stable_mosaic.version = 11 : i64} {
  func.func @bn_prelu_kernel(%arg0: i32, %arg1: i32, %arg2: memref<1x8x256xf32, #tpu.memory_space<vmem>>, %arg3: memref<8x1xf32, #tpu.memory_space<vmem>>, %arg4: memref<8x1xf32, #tpu.memory_space<vmem>>, %arg5: memref<1xf32, #tpu.memory_space<smem>>, %arg6: memref<1x8x256xf32, #tpu.memory_space<vmem>>) attributes {dimension_semantics = [#tpu.dimension_semantics<parallel>, #tpu.dimension_semantics<parallel>], iteration_bounds = array<i64: 2, 1>, scalar_prefetch = 0 : i64, scratch_operands = 0 : i64, tpu.core_type = #tpu.core_type<tc>, window_params = [{transform_indices = @transform_0, window_bounds = array<i64: 1, 8, 256>}, {pipeline_mode = #tpu.pipeline_mode<synchronous>, transform_indices = @transform_1, window_bounds = array<i64: 8, 1>}, {pipeline_mode = #tpu.pipeline_mode<synchronous>, transform_indices = @transform_2, window_bounds = array<i64: 8, 1>}, {transform_indices = @transform_3, window_bounds = array<i64: 1>}, {transform_indices = @transform_4, window_bounds = array<i64: 1, 8, 256>}]} {
    %c0 = arith.constant 0 : index
    %c0_0 = arith.constant 0 : index
    %c0_1 = arith.constant 0 : index
    %0 = vector.load %arg2[%c0, %c0_0, %c0_1] : memref<1x8x256xf32, #tpu.memory_space<vmem>>, vector<1x8x256xf32>
    %1 = vector.shape_cast %0 : vector<1x8x256xf32> to vector<8x256xf32>
    %c0_2 = arith.constant 0 : index
    %c0_3 = arith.constant 0 : index
    %2 = vector.load %arg3[%c0_2, %c0_3] : memref<8x1xf32, #tpu.memory_space<vmem>>, vector<8x1xf32>
    %3 = vector.broadcast %2 : vector<8x1xf32> to vector<8x256xf32>
    %4 = arith.mulf %1, %3 : vector<8x256xf32>
    %c0_4 = arith.constant 0 : index
    %c0_5 = arith.constant 0 : index
    %5 = vector.load %arg4[%c0_4, %c0_5] : memref<8x1xf32, #tpu.memory_space<vmem>>, vector<8x1xf32>
    %6 = vector.broadcast %5 : vector<8x1xf32> to vector<8x256xf32>
    %7 = arith.addf %4, %6 : vector<8x256xf32>
    %c0_6 = arith.constant 0 : index
    %8 = memref.load %arg5[%c0_6] : memref<1xf32, #tpu.memory_space<smem>>
    %cst = arith.constant 0.000000e+00 : f32
    %9 = vector.broadcast %cst : f32 to vector<8x256xf32>
    %10 = arith.cmpf oge, %7, %9 : vector<8x256xf32>
    %11 = vector.broadcast %8 : f32 to vector<8x256xf32>
    %12 = arith.mulf %11, %7 : vector<8x256xf32>
    %13 = arith.select %10, %7, %12 : vector<8x256xi1>, vector<8x256xf32>
    %c0_7 = arith.constant 0 : index
    %c0_8 = arith.constant 0 : index
    %c0_9 = arith.constant 0 : index
    %14 = vector.load %arg6[%c0_7, %c0_8, %c0_9] : memref<1x8x256xf32, #tpu.memory_space<vmem>>, vector<1x8x256xf32>
    %15 = vector.shape_cast %14 : vector<1x8x256xf32> to vector<8x256xf32>
    %16 = vector.shape_cast %13 : vector<8x256xf32> to vector<1x8x256xf32>
    tpu.vector_store %arg6[%c0_7, %c0_8, %c0_9], %16 {strides = array<i32>} : memref<1x8x256xf32, #tpu.memory_space<vmem>>, vector<1x8x256xf32>,
    return
  }
  func.func @transform_0(%arg0: i32, %arg1: i32) -> (i32, i32, i32) {
    %c0_i32 = arith.constant 0 : i32
    %c0_i32_0 = arith.constant 0 : i32
    return %arg0, %c0_i32, %arg1 : i32, i32, i32
  }
  func.func @transform_1(%arg0: i32, %arg1: i32) -> (i32, i32) {
    %c0_i32 = arith.constant 0 : i32
    %c0_i32_0 = arith.constant 0 : i32
    %c0_i32_1 = arith.constant 0 : i32
    return %c0_i32, %c0_i32_0 : i32, i32
  }
  func.func @transform_2(%arg0: i32, %arg1: i32) -> (i32, i32) {
    %c0_i32 = arith.constant 0 : i32
    %c0_i32_0 = arith.constant 0 : i32
    %c0_i32_1 = arith.constant 0 : i32
    return %c0_i32, %c0_i32_0 : i32, i32
  }
  func.func @transform_3(%arg0: i32, %arg1: i32) -> i32 {
    %c0_i32 = arith.constant 0 : i32
    %c0_i32_0 = arith.constant 0 : i32
    return %c0_i32 : i32
  }
  func.func @transform_4(%arg0: i32, %arg1: i32) -> (i32, i32, i32) {
    %c0_i32 = arith.constant 0 : i32
    %c0_i32_0 = arith.constant 0 : i32
    return %arg0, %c0_i32, %arg1 : i32, i32, i32
  }
}

</mosaic_0001>

<llo_original>
// kernel: conv_block_forward.2
$region0: #{conv_block_forward.2}
  #allocation0 [shape = 'u32[]', space=smem, size = 0x4, offset = 0x4, fixed_abs, tag = 'smem constant byte address 0x4 - core index']
  #allocation1 [shape = 'u32[144,128]{1,0:T(1,128)}', space=vmem, size = 0x12000, scoped, tag = 'internal scratch']
  %s0 = inlined_call_operand.vmem [shape: f32[2,40,256], index: 0, kind: input, shape index: {}]
  %s1 = inlined_call_operand.vmem [shape: f32[8,40], index: 1, kind: input, shape index: {}]
  %s2 = inlined_call_operand.vmem [shape: f32[2,8,256], index: 2, kind: output, shape index: {0}]
  %s3 = inlined_call_operand.vmem [shape: f32[2,1,16,1], index: 3, kind: output, shape index: {1}]
  %4 = xla_tuple %s2, %s3
  %s5 = sld [smem:[#allocation0]]
  $region49: #{conv_block_forward.2} parent=0
    _
  %s7 = ssub.s32 1, %s5
  %s8 = scalar_select 0, %s7, %s5
  loop: start=0, step=1, limit=4
  $region2: #{conv_block_forward.2} parent=0 // loop_pre_header
    _
  $region3: #{conv_block_forward.2} parent=0 // loop_header
    %s10 = sphi 0, %s14
    %p11 = scmp.ge.s32.totalorder %s10, 4
    %s17 = sphi 0, %s29
    %s18 = sphi 0, %s25
    %s19 = sphi 0, %s17
    %s20 = sphi 0, %s18
    %s21 = sphi 0, %s19
    %s22 = sphi 0, %s20
    %s34 = sphi 0, %s36
    %s37 = sphi 0, %s34
    %s38 = sphi 0, %s37
    %s54 = sphi 0, %s38
    %s58 = sphi 0, %s58
    %s60 = sphi 0, %s58
    %s61 = sphi 0, %s60
    %s75 = sphi 0, %s61
    %s83 = sphi 0, %s85
    %s86 = sphi 0, %s83
    %s87 = sphi 0, %s86
    %s103 = sphi 0, %s87
    %s111 = sphi 0, %s113
    %s114 = sphi 0, %s111
    %s115 = sphi 0, %s114
    %s131 = sphi 0, %s115
  $region4: #{conv_block_forward.2} parent=0 // loop_header_branch
    %13 = sbr.rel (%p11) target = $region8
  $region5: #{conv_block_forward.2} parent=0 // loop_body
    %s15 = ssub.s32 %s10, 1
    %s16 = ssub.s32 %s10, 2
    %s23 = sadd.s32 1, %s18
    %p24 = scmp.ge.s32.totalorder %s23, 1
    %s25 = scalar_select %p24, 0, %s23
    %s26 = sadd.s32 1, %s17
    %s27 = scalar_select %p24, %s26, %s17
    %p28 = scmp.ge.s32.totalorder %s27, 2
    %s29 = scalar_select %p28, 0, %s27
    %s30 = ssub.s32 %s17, %s29
    %s31 = ssub.s32 %s18, %s25
    %s32 = sor.u32 %s30, %s31
    %p33 = scmp.eq.s32.totalorder %s32, 0
    %s35 = sadd.s32 %s34, 1
    %s36 = scalar_select %p33, %s34, %s35
    %p39 = pneg %p33
    %p40 = scmp.eq.s32.totalorder %s10, 1
    %p41 = por %p39, %p40
    %p42 = scmp.ne.s32.totalorder %s34, %s37
    %p43 = scmp.eq.s32.totalorder %s10, 0
    %p44 = por %p42, %p43
    %p45 = scmp.ne.s32.totalorder %s34, %s37
    %p46 = scmp.eq.s32.totalorder %s15, 1
    %p47 = por %p45, %p46
    %p48 = scmp.ne.s32.totalorder %s37, %s38
    %p49 = scmp.eq.s32.totalorder %s15, 0
    %p50 = por %p48, %p49
    %p51 = scmp.ne.s32.totalorder %s37, %s38
    %p52 = scmp.eq.s32.totalorder %s16, 1
    %p53 = por %p51, %p52
    %p55 = scmp.ne.s32.totalorder %s38, %s54
    %p56 = scmp.eq.s32.totalorder %s16, 0
    %p57 = por %p55, %p56
    %s59 = sadd.s32 %s58, 1
    %p62 = scmp.eq.s32.totalorder %s10, 1
    %p63 = scmp.ne.s32.totalorder %s58, %s60
    %p64 = scmp.eq.s32.totalorder %s10, 0
    %p65 = por %p63, %p64
    %p66 = scmp.ne.s32.totalorder %s58, %s60
    %p67 = scmp.eq.s32.totalorder %s15, 1
    %p68 = por %p66, %p67
    %p69 = scmp.ne.s32.totalorder %s60, %s61
    %p70 = scmp.eq.s32.totalorder %s15, 0
    %p71 = por %p69, %p70
    %p72 = scmp.ne.s32.totalorder %s60, %s61
    %p73 = scmp.eq.s32.totalorder %s16, 1
    %p74 = por %p72, %p73
    %p76 = scmp.ne.s32.totalorder %s61, %s75
    %p77 = scmp.eq.s32.totalorder %s16, 0
    %p78 = por %p76, %p77
    %s79 = ssub.s32 %s17, %s29
    %s80 = ssub.s32 %s18, %s25
    %s81 = sor.u32 %s79, %s80
    %p82 = scmp.eq.s32.totalorder %s81, 0
    %s84 = sadd.s32 %s83, 1
    %s85 = scalar_select %p82, %s83, %s84
    %p88 = pneg %p82
    %p89 = scmp.eq.s32.totalorder %s10, 1
    %p90 = por %p88, %p89
    %p91 = scmp.ne.s32.totalorder %s83, %s86
    %p92 = scmp.eq.s32.totalorder %s10, 0
    %p93 = por %p91, %p92
    %p94 = scmp.ne.s32.totalorder %s83, %s86
    %p95 = scmp.eq.s32.totalorder %s15, 1
    %p96 = por %p94, %p95
    %p97 = scmp.ne.s32.totalorder %s86, %s87
    %p98 = scmp.eq.s32.totalorder %s15, 0
    %p99 = por %p97, %p98
    %p100 = scmp.ne.s32.totalorder %s86, %s87
    %p101 = scmp.eq.s32.totalorder %s16, 1
    %p102 = por %p100, %p101
    %p104 = scmp.ne.s32.totalorder %s87, %s103
    %p105 = scmp.eq.s32.totalorder %s16, 0
    %p106 = por %p104, %p105
    %s107 = ssub.s32 %s17, %s29
    %s108 = ssub.s32 %s18, %s25
    %s109 = sor.u32 %s107, %s108
    %p110 = scmp.eq.s32.totalorder %s109, 0
    %s112 = sadd.s32 %s111, 1
    %s113 = scalar_select %p110, %s111, %s112
    %p116 = pneg %p110
    %p117 = scmp.eq.s32.totalorder %s10, 1
    %p118 = por %p116, %p117
    %p119 = scmp.ne.s32.totalorder %s111, %s114
    %p120 = scmp.eq.s32.totalorder %s10, 0
    %p121 = por %p119, %p120
    %p122 = scmp.ne.s32.totalorder %s111, %s114
    %p123 = scmp.eq.s32.totalorder %s15, 1
    %p124 = por %p122, %p123
    %p125 = scmp.ne.s32.totalorder %s114, %s115
    %p126 = scmp.eq.s32.totalorder %s15, 0
    %p127 = por %p125, %p126
    %p128 = scmp.ne.s32.totalorder %s114, %s115
    %p129 = scmp.eq.s32.totalorder %s16, 1
    %p130 = por %p128, %p129
    %p132 = scmp.ne.s32.totalorder %s115, %s131
    %p133 = scmp.eq.s32.totalorder %s16, 0
    %p134 = por %p132, %p133
    %p135 = scmp.le.s32.totalorder 1, %s10
    %p136 = scmp.lt.s32.totalorder %s10, 3
    %p137 = pnand %p135, %p136
    %p138 = pneg %p137
    // Predicated region
    $region9: #{conv_block_forward.2} parent=5 // pred_check
      _
    $region10: #{conv_block_forward.2} parent=5 // pred_check_branch
      %140 = sbr.rel (%p137) target = $region12
    $region11: #{conv_block_forward.2} parent=5 // pred_region
      %s141 = ssub.s32 %s10, 1
      // Predicated region
      $region13: #{conv_block_forward.2} parent=11 // pred_check
        %p142 = pneg %p71
      $region14: #{conv_block_forward.2} parent=11 // pred_check_branch
        %144 = sbr.rel (%p142) target = $region16
      $region15: #{conv_block_forward.2} parent=11 // pred_region
        _
      $region16: #{conv_block_forward.2} parent=11 // pred_fallthru
        _
    $region12: #{conv_block_forward.2} parent=5 // pred_fallthru
      _
    %p145 = scmp.lt.s32.totalorder %s10, 2
    // Predicated region
    $region17: #{conv_block_forward.2} parent=5 // pred_check
      %p146 = pneg %p145
    $region18: #{conv_block_forward.2} parent=5 // pred_check_branch
      %148 = sbr.rel (%p146) target = $region20
    $region19: #{conv_block_forward.2} parent=5 // pred_region
      // Predicated region
      $region21: #{conv_block_forward.2} parent=19 // pred_check
        %p149 = pneg %p44
      $region22: #{conv_block_forward.2} parent=19 // pred_check_branch
        %151 = sbr.rel (%p149) target = $region24
      $region23: #{conv_block_forward.2} parent=19 // pred_region
        %s152 = smul.u32 2, %s18
        %p153 = scmp.lt.s32.totalorder %s17, 1
        %s154 = scalar_select %p153, %s17, 1
        %p155 = scmp.lt.s32.totalorder %s152, 1
        %s156 = scalar_select %p155, %s152, 1
        %s157 = smul.addr %s154, 10
        %s158 = sadd.s32 %s156, %s157
        %s159 = smul.addr %s158, 8
        %s160 = scalar_lea.vmem %s0, %s159
        %s161 = smul.u32 2, %s18
      $region24: #{conv_block_forward.2} parent=19 // pred_fallthru
        _
    $region20: #{conv_block_forward.2} parent=5 // pred_fallthru
      _
    %p162 = scmp.le.s32.totalorder 1, %s10
    %p163 = scmp.lt.s32.totalorder %s10, 3
    %p164 = pnand %p162, %p163
    %p165 = pneg %p164
    // Predicated region
    $region25: #{conv_block_forward.2} parent=5 // pred_check
      _
    $region26: #{conv_block_forward.2} parent=5 // pred_check_branch
      %167 = sbr.rel (%p164) target = $region28
    $region27: #{conv_block_forward.2} parent=5 // pred_region
      %s168 = ssub.s32 %s10, 1
      %s169 = smul.u32 2, %s20
      %p170 = scmp.lt.s32.totalorder %s19, 1
      %s171 = scalar_select %p170, %s19, 1
      %p172 = scmp.lt.s32.totalorder %s169, 1
      %s173 = scalar_select %p172, %s169, 1
      %s174 = smul.addr %s171, 10
      %s175 = sadd.s32 %s173, %s174
      %s176 = smul.addr %s175, 8
      %s177 = scalar_lea.vmem %s0, %s176
      %p178 = pneg %p50
      %p179 = pneg %p47
      %p180 = pneg %p71
      %p181 = pneg %p68
      %p182 = pneg %p99
      %p183 = pneg %p96
      %s184 = smul.u32 2, %s20
      %p185 = scmp.lt.s32.totalorder %s19, 1
      %s186 = scalar_select %p185, %s19, 1
      %p187 = scmp.lt.s32.totalorder %s184, 1
      %s188 = scalar_select %p187, %s184, 1
      %s189 = smul.addr %s186, 2
      %s190 = sadd.s32 %s188, %s189
      %s191 = smul.addr %s190, 8
      %s192 = scalar_lea.vmem %s2, %s191
      %p193 = pneg %p127
      %p194 = pneg %p124
      %p195 = scmp.lt.s32.totalorder %s19, 1
      %s196 = scalar_select %p195, %s19, 1
      %p197 = scmp.lt.s32.totalorder %s20, 0
      %s198 = scalar_select %p197, %s20, 0
      %s199 = smul.addr %s198, 2
      %s200 = smul.addr %s196, 2
      %s201 = sadd.s32 %s199, %s200
      %s202 = smul.addr %s201, 8
      %s203 = scalar_lea.vmem %s3, %s202
      %s204 = smul.u32 2, %s20
      %p205 = scmp.lt.s32.totalorder %s19, 1
      %s206 = scalar_select %p205, %s19, 1
      %p207 = scmp.lt.s32.totalorder %s204, 1
      %s208 = scalar_select %p207, %s204, 1
      %s209 = smul.addr %s206, 10
      %s210 = sadd.s32 %s208, %s209
      %s211 = smul.addr %s210, 8
      %s212 = scalar_lea.vmem %s0, %s211
      %s213 = smul.u32 2, %s20
      %s214 = smul.u32 2, %s20
      %p215 = scmp.lt.s32.totalorder %s19, 1
      %s216 = scalar_select %p215, %s19, 1
      %p217 = scmp.lt.s32.totalorder %s214, 1
      %s218 = scalar_select %p217, %s214, 1
      %s219 = smul.addr %s216, 2
      %s220 = sadd.s32 %s218, %s219
      %s221 = smul.addr %s220, 8
      %s222 = scalar_lea.vmem %s2, %s221
      %s223 = smul.u32 2, %s20
      %p224 = scmp.lt.s32.totalorder %s19, 1
      %s225 = scalar_select %p224, %s19, 1
      %p226 = scmp.lt.s32.totalorder %s20, 0
      %s227 = scalar_select %p226, %s20, 0
      %s228 = smul.addr %s227, 2
      %s229 = smul.addr %s225, 2
      %s230 = sadd.s32 %s228, %s229
      %s231 = smul.addr %s230, 8
      %s232 = scalar_lea.vmem %s3, %s231
      %v233 = vld [vmem:[%s1] sm:$0xff]
      %v234 = vld [vmem:[%s212] sm:$0xff]
      %v235 = vld [vmem:[%s212 + $0x8] sm:$0xff]
      %v236 = vld [vmem:[%s212 + $0x10] sm:$0xff]
      %v237 = vld [vmem:[%s212 + $0x18] sm:$0xff]
      %v238 = vld [vmem:[%s212 + $0x20] sm:$0xff]
      %v239 = vld [vmem:[%s212 + $0x28] sm:$0xff]
      %v240 = vld [vmem:[%s212 + $0x30] sm:$0xff]
      %v241 = vld [vmem:[%s212 + $0x38] sm:$0xff]
      %v242 = vld [vmem:[%s212 + $0x40] sm:$0xff]
      %v243 = vld [vmem:[%s212 + $0x48] sm:$0xff]
      %vm244 = vcmask 326656
      %v246 = vsel %vm244, %v233, 0
      %248 = vmatprep.subr.mxu0 %v235
      %249 = vmatpush1.msra.mxu0 %v234
      %250 = vmatprep.subr.mxu0 %v237
      %251 = vmatpush1.msra.mxu0 %v236
      %252 = vmatprep.subr.mxu0 %v239
      %253 = vmatpush1.msra.mxu0 %v238
      %254 = vmatprep.subr.mxu0 %v241
      %255 = vmatpush1.msra.mxu0 %v240
      %256 = vmatprep.subr.mxu0 %v243
      %257 = vmatpush1.msra.mxu0 %v242
      %258 = vmatprep.subr.mxu0 0.0
      %259 = vmatpush1.msra.mxu0 0.0
      %260 = vmatprep.subr.mxu0 0.0
      %261 = vmatpush1.msra.mxu0 0.0
      %262 = vmatprep.subr.mxu0 0.0
      %263 = vmatpush1.msra.mxu0 0.0
      %264 = vmatprep.subr.mxu0 0.0
      %265 = vmatpush1.msra.mxu0 0.0
      %266 = vmatprep.subr.mxu0 0.0
      %267 = vmatpush1.msra.mxu0 0.0
      %268 = vmatprep.subr.mxu0 0.0
      %269 = vmatpush1.msra.mxu0 0.0
      %270 = vmatprep.subr.mxu0 0.0
      %271 = vmatpush1.msra.mxu0 0.0
      %272 = vmatprep.subr.mxu0 0.0
      %273 = vmatpush1.msra.mxu0 0.0
      %274 = vmatprep.subr.mxu0 0.0
      %275 = vmatpush1.msra.mxu0 0.0
      %276 = vmatprep.subr.mxu0 0.0
      %277 = vmatpush1.msra.mxu0 0.0
      %278 = vmatprep.subr.mxu0 0.0
      %279 = vmatpush1.msra.mxu0 0.0
      %280 = vmatprep.subr.mxu0 0.0
      %281 = vmatpush1.msra.mxu0 0.0
      %282 = vmatprep.subr.mxu0 0.0
      %283 = vmatpush1.msra.mxu0 0.0
      %284 = vmatprep.subr.mxu0 0.0
      %285 = vmatpush1.msra.mxu0 0.0
      %286 = vmatprep.subr.mxu0 0.0
      %287 = vmatpush1.msra.mxu0 0.0
      %288 = vmatprep.subr.mxu0 0.0
      %289 = vmatpush1.msra.mxu0 0.0
      %290 = vmatprep.subr.mxu0 0.0
      %291 = vmatpush1.msra.mxu0 0.0
      %292 = vmatprep.subr.mxu0 0.0
      %293 = vmatpush1.msra.mxu0 0.0
      %294 = vmatprep.subr.mxu0 0.0
      %295 = vmatpush1.msra.mxu0 0.0
      %296 = vmatprep.subr.mxu0 0.0
      %297 = vmatpush1.msra.mxu0 0.0
      %298 = vmatprep.subr.mxu0 0.0
      %299 = vmatpush1.msra.mxu0 0.0
      %300 = vmatprep.subr.mxu0 0.0
      %301 = vmatpush1.msra.mxu0 0.0
      %302 = vmatprep.subr.mxu0 0.0
      %303 = vmatpush1.msra.mxu0 0.0
      %304 = vmatprep.subr.mxu0 0.0
      %305 = vmatpush1.msra.mxu0 0.0
      %306 = vmatprep.subr.mxu0 0.0
      %307 = vmatpush1.msra.mxu0 0.0
      %308 = vmatprep.subr.mxu0 0.0
      %309 = vmatpush1.msra.mxu0 0.0
      %310 = vmatprep.subr.mxu0 0.0
      %311 = vmatpush1.msra.mxu0 0.0
      %312 = vmatprep.mubr.f32.mxu0 0.0
      %313 = vmatmul.mubr.f32.gmra.mrb[0].mxu0 %v246
      %v314 = vpop.f32.mrb[0].mxu0
      %v315 = vadd.f32 0.0, %v314
      %v316 = vpop.f32.mrb[0].mxu0
      %v317 = vadd.f32 0.0, %v316
      %318 = vdwg.mxu0
      %319 = vst [vmem:[%s222] sm:$0xff] %v315
      %320 = vst [vmem:[%s222 + $0x8] sm:$0xff] %v317
      %v321 = vmul.f32 %v315, %v315
      %v322 = vmul.f32 %v317, %v317
      %v323 = vadd.f32 %v315, %v317
      %324 = vadd.xlane.f32.xlu0 %v323
      %v325 = vpop.xlane.xlu0 %324
      %v326 = vadd.f32 %v321, %v322
      %327 = vadd.xlane.f32.xlu0 %v326
      %v328 = vpop.xlane.xlu0 %327
      %vm329 = vcmask 7168
      %330 = vst.msk [vmem:[%s232] sm:$0xff] %vm329, %v325
      %331 = vst.msk [vmem:[%s232 + $0x8] sm:$0xff] %vm329, %v328
      %s332 = smul.u32 2, %s20
      %p333 = scmp.lt.s32.totalorder %s19, 1
      %s334 = scalar_select %p333, %s19, 1
      %p335 = scmp.lt.s32.totalorder %s332, 1
      %s336 = scalar_select %p335, %s332, 1
      %s337 = smul.addr %s334, 2
      %s338 = sadd.s32 %s336, %s337
      %s339 = smul.addr %s338, 8
      %s340 = scalar_lea.vmem %s2, %s339
      %p341 = scmp.lt.s32.totalorder %s19, 1
      %s342 = scalar_select %p341, %s19, 1
      %p343 = scmp.lt.s32.totalorder %s20, 0
      %s344 = scalar_select %p343, %s20, 0
      %s345 = smul.addr %s344, 2
      %s346 = smul.addr %s342, 2
      %s347 = sadd.s32 %s345, %s346
      %s348 = smul.addr %s347, 8
      %s349 = scalar_lea.vmem %s3, %s348
      // Predicated region
      $region29: #{conv_block_forward.2} parent=27 // pred_check
        %p350 = pneg %p96
      $region30: #{conv_block_forward.2} parent=27 // pred_check_branch
        %352 = sbr.rel (%p350) target = $region32
      $region31: #{conv_block_forward.2} parent=27 // pred_region
        %s353 = smul.u32 2, %s20
      $region32: #{conv_block_forward.2} parent=27 // pred_fallthru
        _
      // Predicated region
      $region33: #{conv_block_forward.2} parent=27 // pred_check
        %p354 = pneg %p124
      $region34: #{conv_block_forward.2} parent=27 // pred_check_branch
        %356 = sbr.rel (%p354) target = $region36
      $region35: #{conv_block_forward.2} parent=27 // pred_region
        _
      $region36: #{conv_block_forward.2} parent=27 // pred_fallthru
        _
    $region28: #{conv_block_forward.2} parent=5 // pred_fallthru
      _
    %p357 = scmp.le.s32.totalorder 2, %s10
    // Predicated region
    $region37: #{conv_block_forward.2} parent=5 // pred_check
      %p358 = pneg %p357
    $region38: #{conv_block_forward.2} parent=5 // pred_check_branch
      %360 = sbr.rel (%p358) target = $region40
    $region39: #{conv_block_forward.2} parent=5 // pred_region
      %s361 = ssub.s32 %s10, 2
      // Predicated region
      $region41: #{conv_block_forward.2} parent=39 // pred_check
        %p362 = pneg %p102
      $region42: #{conv_block_forward.2} parent=39 // pred_check_branch
        %364 = sbr.rel (%p362) target = $region44
      $region43: #{conv_block_forward.2} parent=39 // pred_region
        %s365 = smul.u32 2, %s22
        %p366 = scmp.lt.s32.totalorder %s21, 1
        %s367 = scalar_select %p366, %s21, 1
        %p368 = scmp.lt.s32.totalorder %s365, 1
        %s369 = scalar_select %p368, %s365, 1
        %s370 = smul.addr %s367, 2
        %s371 = sadd.s32 %s369, %s370
        %s372 = smul.addr %s371, 8
        %s373 = scalar_lea.vmem %s2, %s372
      $region44: #{conv_block_forward.2} parent=39 // pred_fallthru
        _
      // Predicated region
      $region45: #{conv_block_forward.2} parent=39 // pred_check
        %p374 = pneg %p130
      $region46: #{conv_block_forward.2} parent=39 // pred_check_branch
        %376 = sbr.rel (%p374) target = $region48
      $region47: #{conv_block_forward.2} parent=39 // pred_region
        %p377 = scmp.lt.s32.totalorder %s21, 1
        %s378 = scalar_select %p377, %s21, 1
        %p379 = scmp.lt.s32.totalorder %s22, 0
        %s380 = scalar_select %p379, %s22, 0
        %s381 = smul.addr %s380, 2
        %s382 = smul.addr %s378, 2
        %s383 = sadd.s32 %s381, %s382
        %s384 = smul.addr %s383, 8
        %s385 = scalar_lea.vmem %s3, %s384
      $region48: #{conv_block_forward.2} parent=39 // pred_fallthru
        _
    $region40: #{conv_block_forward.2} parent=5 // pred_fallthru
      _
  $region6: #{conv_block_forward.2} parent=0 // loop_footer
    %s14 = sadd.s32 1, %s10
  $region7: #{conv_block_forward.2} parent=0 // loop_footer_branch
    %9 = sbr.rel target = $region3
  $region8: #{conv_block_forward.2} parent=0 // loop_exit
    _

// kernel: conv_block_forward.3
$region0: #{conv_block_forward.3}
  #allocation0 [shape = 'u32[]', space=smem, size = 0x4, offset = 0x4, fixed_abs, tag = 'smem constant byte address 0x4 - core index']
  #allocation1 [shape = 'u32[144,128]{1,0:T(1,128)}', space=vmem, size = 0x12000, scoped, tag = 'internal scratch']
  #allocation2 [shape = 'f32[1]{0:T(128)S(6)}', space=smem, size = 0x200, scoped, tag = 'scoped memory for conv_block_forward.3']
  %s0 = inlined_call_operand.vmem [shape: f32[2,8,256], index: 0, kind: input, shape index: {}, may-alias: {0,4}]
  %s1 = inlined_call_operand.vmem [shape: f32[8,1], index: 1, kind: input, shape index: {}]
  %s2 = inlined_call_operand.vmem [shape: f32[8,1], index: 2, kind: input, shape index: {}]
  %s3 = inlined_call_operand.<no memory space> [shape: f32[1], index: 3, kind: input, shape index: {}]
  %s4 = inlined_call_operand.vmem [shape: f32[2,8,256], index: 4, kind: output, shape index: {}, may-alias: {0,4}]
  %s5 = sld [smem:[#allocation0]]
  $region49: #{conv_block_forward.3} parent=0
    _
  %s7 = ssub.s32 1, %s5
  %s8 = scalar_select 0, %s7, %s5
  %9 = sst [smem:[#allocation2]] %s3
  loop: start=0, step=1, limit=4
  $region2: #{conv_block_forward.3} parent=0 // loop_pre_header
    _
  $region3: #{conv_block_forward.3} parent=0 // loop_header
    %s11 = sphi 0, %s15
    %p12 = scmp.ge.s32.totalorder %s11, 4
    %s18 = sphi 0, %s30
    %s19 = sphi 0, %s26
    %s20 = sphi 0, %s18
    %s21 = sphi 0, %s19
    %s22 = sphi 0, %s20
    %s23 = sphi 0, %s21
    %s35 = sphi 0, %s37
    %s38 = sphi 0, %s35
    %s39 = sphi 0, %s38
    %s55 = sphi 0, %s39
    %s59 = sphi 0, %s59
    %s61 = sphi 0, %s59
    %s62 = sphi 0, %s61
    %s76 = sphi 0, %s62
    %s80 = sphi 0, %s80
    %s82 = sphi 0, %s80
    %s83 = sphi 0, %s82
    %s97 = sphi 0, %s83
    %s101 = sphi 0, %s101
    %s103 = sphi 0, %s101
    %s104 = sphi 0, %s103
    %s118 = sphi 0, %s104
    %s126 = sphi 0, %s128
    %s129 = sphi 0, %s126
    %s130 = sphi 0, %s129
    %s146 = sphi 0, %s130
  $region4: #{conv_block_forward.3} parent=0 // loop_header_branch
    %14 = sbr.rel (%p12) target = $region8
  $region5: #{conv_block_forward.3} parent=0 // loop_body
    %s16 = ssub.s32 %s11, 1
    %s17 = ssub.s32 %s11, 2
    %s24 = sadd.s32 1, %s19
    %p25 = scmp.ge.s32.totalorder %s24, 1
    %s26 = scalar_select %p25, 0, %s24
    %s27 = sadd.s32 1, %s18
    %s28 = scalar_select %p25, %s27, %s18
    %p29 = scmp.ge.s32.totalorder %s28, 2
    %s30 = scalar_select %p29, 0, %s28
    %s31 = ssub.s32 %s18, %s30
    %s32 = ssub.s32 %s19, %s26
    %s33 = sor.u32 %s31, %s32
    %p34 = scmp.eq.s32.totalorder %s33, 0
    %s36 = sadd.s32 %s35, 1
    %s37 = scalar_select %p34, %s35, %s36
    %p40 = pneg %p34
    %p41 = scmp.eq.s32.totalorder %s11, 1
    %p42 = por %p40, %p41
    %p43 = scmp.ne.s32.totalorder %s35, %s38
    %p44 = scmp.eq.s32.totalorder %s11, 0
    %p45 = por %p43, %p44
    %p46 = scmp.ne.s32.totalorder %s35, %s38
    %p47 = scmp.eq.s32.totalorder %s16, 1
    %p48 = por %p46, %p47
    %p49 = scmp.ne.s32.totalorder %s38, %s39
    %p50 = scmp.eq.s32.totalorder %s16, 0
    %p51 = por %p49, %p50
    %p52 = scmp.ne.s32.totalorder %s38, %s39
    %p53 = scmp.eq.s32.totalorder %s17, 1
    %p54 = por %p52, %p53
    %p56 = scmp.ne.s32.totalorder %s39, %s55
    %p57 = scmp.eq.s32.totalorder %s17, 0
    %p58 = por %p56, %p57
    %s60 = sadd.s32 %s59, 1
    %p63 = scmp.eq.s32.totalorder %s11, 1
    %p64 = scmp.ne.s32.totalorder %s59, %s61
    %p65 = scmp.eq.s32.totalorder %s11, 0
    %p66 = por %p64, %p65
    %p67 = scmp.ne.s32.totalorder %s59, %s61
    %p68 = scmp.eq.s32.totalorder %s16, 1
    %p69 = por %p67, %p68
    %p70 = scmp.ne.s32.totalorder %s61, %s62
    %p71 = scmp.eq.s32.totalorder %s16, 0
    %p72 = por %p70, %p71
    %p73 = scmp.ne.s32.totalorder %s61, %s62
    %p74 = scmp.eq.s32.totalorder %s17, 1
    %p75 = por %p73, %p74
    %p77 = scmp.ne.s32.totalorder %s62, %s76
    %p78 = scmp.eq.s32.totalorder %s17, 0
    %p79 = por %p77, %p78
    %s81 = sadd.s32 %s80, 1
    %p84 = scmp.eq.s32.totalorder %s11, 1
    %p85 = scmp.ne.s32.totalorder %s80, %s82
    %p86 = scmp.eq.s32.totalorder %s11, 0
    %p87 = por %p85, %p86
    %p88 = scmp.ne.s32.totalorder %s80, %s82
    %p89 = scmp.eq.s32.totalorder %s16, 1
    %p90 = por %p88, %p89
    %p91 = scmp.ne.s32.totalorder %s82, %s83
    %p92 = scmp.eq.s32.totalorder %s16, 0
    %p93 = por %p91, %p92
    %p94 = scmp.ne.s32.totalorder %s82, %s83
    %p95 = scmp.eq.s32.totalorder %s17, 1
    %p96 = por %p94, %p95
    %p98 = scmp.ne.s32.totalorder %s83, %s97
    %p99 = scmp.eq.s32.totalorder %s17, 0
    %p100 = por %p98, %p99
    %s102 = sadd.s32 %s101, 1
    %p105 = scmp.eq.s32.totalorder %s11, 1
    %p106 = scmp.ne.s32.totalorder %s101, %s103
    %p107 = scmp.eq.s32.totalorder %s11, 0
    %p108 = por %p106, %p107
    %p109 = scmp.ne.s32.totalorder %s101, %s103
    %p110 = scmp.eq.s32.totalorder %s16, 1
    %p111 = por %p109, %p110
    %p112 = scmp.ne.s32.totalorder %s103, %s104
    %p113 = scmp.eq.s32.totalorder %s16, 0
    %p114 = por %p112, %p113
    %p115 = scmp.ne.s32.totalorder %s103, %s104
    %p116 = scmp.eq.s32.totalorder %s17, 1
    %p117 = por %p115, %p116
    %p119 = scmp.ne.s32.totalorder %s104, %s118
    %p120 = scmp.eq.s32.totalorder %s17, 0
    %p121 = por %p119, %p120
    %s122 = ssub.s32 %s18, %s30
    %s123 = ssub.s32 %s19, %s26
    %s124 = sor.u32 %s122, %s123
    %p125 = scmp.eq.s32.totalorder %s124, 0
    %s127 = sadd.s32 %s126, 1
    %s128 = scalar_select %p125, %s126, %s127
    %p131 = pneg %p125
    %p132 = scmp.eq.s32.totalorder %s11, 1
    %p133 = por %p131, %p132
    %p134 = scmp.ne.s32.totalorder %s126, %s129
    %p135 = scmp.eq.s32.totalorder %s11, 0
    %p136 = por %p134, %p135
    %p137 = scmp.ne.s32.totalorder %s126, %s129
    %p138 = scmp.eq.s32.totalorder %s16, 1
    %p139 = por %p137, %p138
    %p140 = scmp.ne.s32.totalorder %s129, %s130
    %p141 = scmp.eq.s32.totalorder %s16, 0
    %p142 = por %p140, %p141
    %p143 = scmp.ne.s32.totalorder %s129, %s130
    %p144 = scmp.eq.s32.totalorder %s17, 1
    %p145 = por %p143, %p144
    %p147 = scmp.ne.s32.totalorder %s130, %s146
    %p148 = scmp.eq.s32.totalorder %s17, 0
    %p149 = por %p147, %p148
    %p150 = scmp.le.s32.totalorder 1, %s11
    %p151 = scmp.lt.s32.totalorder %s11, 3
    %p152 = pnand %p150, %p151
    %p153 = pneg %p152
    // Predicated region
    $region9: #{conv_block_forward.3} parent=5 // pred_check
      _
    $region10: #{conv_block_forward.3} parent=5 // pred_check_branch
      %155 = sbr.rel (%p152) target = $region12
    $region11: #{conv_block_forward.3} parent=5 // pred_region
      %s156 = ssub.s32 %s11, 1
      // Predicated region
      $region13: #{conv_block_forward.3} parent=11 // pred_check
        %p157 = pneg %p72
      $region14: #{conv_block_forward.3} parent=11 // pred_check_branch
        %159 = sbr.rel (%p157) target = $region16
      $region15: #{conv_block_forward.3} parent=11 // pred_region
        _
      $region16: #{conv_block_forward.3} parent=11 // pred_fallthru
        _
      // Predicated region
      $region17: #{conv_block_forward.3} parent=11 // pred_check
        %p160 = pneg %p93
      $region18: #{conv_block_forward.3} parent=11 // pred_check_branch
        %162 = sbr.rel (%p160) target = $region20
      $region19: #{conv_block_forward.3} parent=11 // pred_region
        _
      $region20: #{conv_block_forward.3} parent=11 // pred_fallthru
        _
      // Predicated region
      $region21: #{conv_block_forward.3} parent=11 // pred_check
        %p163 = pneg %p114
      $region22: #{conv_block_forward.3} parent=11 // pred_check_branch
        %165 = sbr.rel (%p163) target = $region24
      $region23: #{conv_block_forward.3} parent=11 // pred_region
        _
      $region24: #{conv_block_forward.3} parent=11 // pred_fallthru
        _
    $region12: #{conv_block_forward.3} parent=5 // pred_fallthru
      _
    %p166 = scmp.lt.s32.totalorder %s11, 2
    // Predicated region
    $region25: #{conv_block_forward.3} parent=5 // pred_check
      %p167 = pneg %p166
    $region26: #{conv_block_forward.3} parent=5 // pred_check_branch
      %169 = sbr.rel (%p167) target = $region28
    $region27: #{conv_block_forward.3} parent=5 // pred_region
      // Predicated region
      $region29: #{conv_block_forward.3} parent=27 // pred_check
        %p170 = pneg %p45
      $region30: #{conv_block_forward.3} parent=27 // pred_check_branch
        %172 = sbr.rel (%p170) target = $region32
      $region31: #{conv_block_forward.3} parent=27 // pred_region
        %s173 = smul.u32 2, %s19
        %p174 = scmp.lt.s32.totalorder %s18, 1
        %s175 = scalar_select %p174, %s18, 1
        %p176 = scmp.lt.s32.totalorder %s173, 1
        %s177 = scalar_select %p176, %s173, 1
        %s178 = smul.addr %s175, 2
        %s179 = sadd.s32 %s177, %s178
        %s180 = smul.addr %s179, 8
        %s181 = scalar_lea.vmem %s0, %s180
        %s182 = smul.u32 2, %s19
      $region32: #{conv_block_forward.3} parent=27 // pred_fallthru
        _
    $region28: #{conv_block_forward.3} parent=5 // pred_fallthru
      _
    %p183 = scmp.le.s32.totalorder 1, %s11
    %p184 = scmp.lt.s32.totalorder %s11, 3
    %p185 = pnand %p183, %p184
    %p186 = pneg %p185
    // Predicated region
    $region33: #{conv_block_forward.3} parent=5 // pred_check
      _
    $region34: #{conv_block_forward.3} parent=5 // pred_check_branch
      %188 = sbr.rel (%p185) target = $region36
    $region35: #{conv_block_forward.3} parent=5 // pred_region
      %s189 = ssub.s32 %s11, 1
      %s190 = smul.u32 2, %s21
      %p191 = scmp.lt.s32.totalorder %s20, 1
      %s192 = scalar_select %p191, %s20, 1
      %p193 = scmp.lt.s32.totalorder %s190, 1
      %s194 = scalar_select %p193, %s190, 1
      %s195 = smul.addr %s192, 2
      %s196 = sadd.s32 %s194, %s195
      %s197 = smul.addr %s196, 8
      %s198 = scalar_lea.vmem %s0, %s197
      %p199 = pneg %p51
      %p200 = pneg %p48
      %p201 = pneg %p72
      %p202 = pneg %p69
      %p203 = pneg %p93
      %p204 = pneg %p90
      %p205 = pneg %p114
      %p206 = pneg %p111
      %p207 = pneg %p142
      %p208 = pneg %p139
      %s209 = smul.u32 2, %s21
      %p210 = scmp.lt.s32.totalorder %s20, 1
      %s211 = scalar_select %p210, %s20, 1
      %p212 = scmp.lt.s32.totalorder %s209, 1
      %s213 = scalar_select %p212, %s209, 1
      %s214 = smul.addr %s211, 2
      %s215 = sadd.s32 %s213, %s214
      %s216 = smul.addr %s215, 8
      %s217 = scalar_lea.vmem %s4, %s216
      %s218 = smul.u32 2, %s21
      %p219 = scmp.lt.s32.totalorder %s20, 1
      %s220 = scalar_select %p219, %s20, 1
      %p221 = scmp.lt.s32.totalorder %s218, 1
      %s222 = scalar_select %p221, %s218, 1
      %s223 = smul.addr %s220, 2
      %s224 = sadd.s32 %s222, %s223
      %s225 = smul.addr %s224, 8
      %s226 = scalar_lea.vmem %s0, %s225
      %s227 = smul.u32 2, %s21
      %s228 = smul.u32 2, %s21
      %p229 = scmp.lt.s32.totalorder %s20, 1
      %s230 = scalar_select %p229, %s20, 1
      %p231 = scmp.lt.s32.totalorder %s228, 1
      %s232 = scalar_select %p231, %s228, 1
      %s233 = smul.addr %s230, 2
      %s234 = sadd.s32 %s232, %s233
      %s235 = smul.addr %s234, 8
      %s236 = scalar_lea.vmem %s4, %s235
      %s237 = smul.u32 2, %s21
      %v238 = vld [vmem:[%s226] sm:$0xff]
      %v239 = vld [vmem:[%s226 + $0x8] sm:$0xff]
      %v240 = vld [vmem:[%s1] sm:$0xff]
      %242 = vset.pattern.permute.xlu0 0
      %243 = vperm.xlu0 %242, %v240
      %v244 = vpop.permute.xlu0 %243
      %v246 = vmul.f32 %v238, %v244
      %v247 = vmul.f32 %v239, %v244
      %v248 = vld [vmem:[%s2] sm:$0xff]
      %250 = vset.pattern.permute.xlu0 0
      %251 = vperm.xlu0 %250, %v248
      %v252 = vpop.permute.xlu0 %251
      %v254 = vadd.f32 %v246, %v252
      %v255 = vadd.f32 %v247, %v252
      %s256 = sld [smem:[#allocation2]]
      %vm257 = vcmp.ge.f32.partialorder %v254, 0.0
      %vm258 = vcmp.ge.f32.partialorder %v255, 0.0
      %v259 = vstv %s256
      %v260 = vmul.f32 %v259, %v254
      %v261 = vmul.f32 %v259, %v255
      %v262 = vsel %vm257, %v254, %v260
      %v263 = vsel %vm258, %v255, %v261
      %264 = vst [vmem:[%s236] sm:$0xff] %v262
      %265 = vst [vmem:[%s236 + $0x8] sm:$0xff] %v263
      %s266 = smul.u32 2, %s21
      %p267 = scmp.lt.s32.totalorder %s20, 1
      %s268 = scalar_select %p267, %s20, 1
      %p269 = scmp.lt.s32.totalorder %s266, 1
      %s270 = scalar_select %p269, %s266, 1
      %s271 = smul.addr %s268, 2
      %s272 = sadd.s32 %s270, %s271
      %s273 = smul.addr %s272, 8
      %s274 = scalar_lea.vmem %s4, %s273
      // Predicated region
      $region37: #{conv_block_forward.3} parent=35 // pred_check
        %p275 = pneg %p139
      $region38: #{conv_block_forward.3} parent=35 // pred_check_branch
        %277 = sbr.rel (%p275) target = $region40
      $region39: #{conv_block_forward.3} parent=35 // pred_region
        %s278 = smul.u32 2, %s21
      $region40: #{conv_block_forward.3} parent=35 // pred_fallthru
        _
    $region36: #{conv_block_forward.3} parent=5 // pred_fallthru
      _
    %p279 = scmp.le.s32.totalorder 2, %s11
    // Predicated region
    $region41: #{conv_block_forward.3} parent=5 // pred_check
      %p280 = pneg %p279
    $region42: #{conv_block_forward.3} parent=5 // pred_check_branch
      %282 = sbr.rel (%p280) target = $region44
    $region43: #{conv_block_forward.3} parent=5 // pred_region
      %s283 = ssub.s32 %s11, 2
      // Predicated region
      $region45: #{conv_block_forward.3} parent=43 // pred_check
        %p284 = pneg %p145
      $region46: #{conv_block_forward.3} parent=43 // pred_check_branch
        %286 = sbr.rel (%p284) target = $region48
      $region47: #{conv_block_forward.3} parent=43 // pred_region
        %s287 = smul.u32 2, %s23
        %p288 = scmp.lt.s32.totalorder %s22, 1
        %s289 = scalar_select %p288, %s22, 1
        %p290 = scmp.lt.s32.totalorder %s287, 1
        %s291 = scalar_select %p290, %s287, 1
        %s292 = smul.addr %s289, 2
        %s293 = sadd.s32 %s291, %s292
        %s294 = smul.addr %s293, 8
        %s295 = scalar_lea.vmem %s4, %s294
      $region48: #{conv_block_forward.3} parent=43 // pred_fallthru
        _
    $region44: #{conv_block_forward.3} parent=5 // pred_fallthru
      _
  $region6: #{conv_block_forward.3} parent=0 // loop_footer
    %s15 = sadd.s32 1, %s11
  $region7: #{conv_block_forward.3} parent=0 // loop_footer_branch
    %10 = sbr.rel target = $region3
  $region8: #{conv_block_forward.3} parent=0 // loop_exit
    _

</llo_original>
